<compile_context>
chip_gen: v6e
topology: v6e:2x2x1
jax: 0.10.0
libtpu: 0.0.40
codegen_flags: <defaults>
</compile_context>

<pallas_src>
import functools

import jax
import jax.numpy as jnp
from jax.experimental import pallas as pl
from jax.experimental.pallas import tpu as pltpu


def _round_up(x, m):
    return ((x + m - 1) // m) * m


def _vmem_budget_and_limit():
    """Generation-aware VMEM sizing.  Falls back to a v7x-safe 64 MiB capacity."""
    cap = None
    try:
        info = pltpu.get_tpu_info()
        cap = getattr(info, "vmem_capacity_bytes", None)
    except Exception:
        cap = None
    if not cap:
        cap = 64 * 1024 * 1024          # conservative (v7x size); v5e/v6e have 128 MiB
    budget = int(cap * 0.4)             # working-set target for the tiled input + temps
    limit = int(cap * 0.75)             # scoped-VMEM limit passed to the compiler
    return budget, limit


def _choose_row_tile(rows, hw, in_itemsize, vmem_budget):
    """Pick the largest row tile that keeps the pipelined working set in VMEM."""
    # Per row: double-buffered input tile + f32 copy + x*x temp.
    bytes_per_row = hw * (2 * in_itemsize + 2 * 4)
    max_rows = max(8, int(vmem_budget // max(bytes_per_row, 1)))
    max_rows = min(max_rows, 1024)      # diminishing returns past ~1K rows per step
    if rows <= max_rows:
        return _round_up(rows, 8)       # single tile covers everything
    # Multi-step grid: tile must be a multiple of 128 so the lane-dense
    # (3, row_tile) / (2, row_tile) blocks satisfy the (8,128) tiling rule.
    return max(128, (max_rows // 128) * 128)
    # TODO(synk): for extremely large H*W (>~24K), add an inner reduction grid axis
    # over HW with VMEM partial-sum scratch instead of loading full (row_tile, HW) slabs.


def _bn_matching_kernel(x_ref, tgt_ref, stats_ref, *, hw, total_rows, row_tile):
    """One grid step = one tile of `row_tile` (batch, channel) rows.

    x_ref     : (row_tile, hw)   input rows, native dtype
    tgt_ref   : (2, row_tile)    row 0 = target mean, row 1 = target std (f32)
    stats_ref : (3, row_tile)    row 0 = mean, row 1 = std, row 2 = masked sq. error
    """
    x = x_ref[...].astype(jnp.float32)                                   # (TR, HW)

    # Lane-dense per-row sums via the MXU: ones(8,HW) contracted with x over HW
    # (flash-attention-style "NT" dimension numbers) -> (8, TR); take row 0.
    ones = jnp.ones((8, hw), dtype=jnp.float32)
    nt_dims = (((1,), (1,)), ((), ()))
    s1 = jax.lax.dot_general(ones, x, nt_dims,
                             preferred_element_type=jnp.float32)[0:1, :]  # (1, TR)
    s2 = jax.lax.dot_general(ones, x * x, nt_dims,
                             preferred_element_type=jnp.float32)[0:1, :]  # (1, TR)

    inv_hw = 1.0 / hw
    inv_nm1 = 1.0 / (hw - 1) if hw > 1 else float("nan")   # torch.std: unbiased; NaN for N==1
    mu = s1 * inv_hw                                        # (1, TR)
    var = (s2 - s1 * mu) * inv_nm1                          # one-pass unbiased variance
    std = jnp.sqrt(jnp.maximum(var, 0.0))                   # clamp tiny negative rounding

    # Per-row squared error vs. targets; rows beyond the true row count
    # (ragged last tile / padding) are masked out of the loss.
    row0 = pl.program_id(0) * row_tile
    lane = jax.lax.broadcasted_iota(jnp.int32, (1, row_tile), 1)
    valid = (row0 + lane) < total_rows
    dm = mu - tgt_ref[0:1, :]
    ds = std - tgt_ref[1:2, :]
    sq_err = jnp.where(valid, dm * dm + ds * ds, 0.0)

    stats_ref[0:1, :] = mu
    stats_ref[1:2, :] = std
    stats_ref[2:3, :] = sq_err


def _bn_matching_forward(x_2d, targets_2r):
    """x_2d: (rows, HW) native dtype; targets_2r: (2, rows) f32.

    Returns (mu (rows,), std (rows,), loss ())."""
    rows, hw = x_2d.shape
    budget, vmem_limit = _vmem_budget_and_limit()
    row_tile = _choose_row_tile(rows, hw, jnp.dtype(x_2d.dtype).itemsize, budget)
    grid = pl.cdiv(rows, row_tile)
    r_pad = grid * row_tile

    targets = targets_2r
    if r_pad != rows:                                   # pad the tiny target array only
        targets = jnp.pad(targets, ((0, 0), (0, r_pad - rows)))

    kernel = functools.partial(_bn_matching_kernel, hw=hw,
                               total_rows=rows, row_tile=row_tile)

    stats = pl.pallas_call(
        kernel,
        out_shape=jax.ShapeDtypeStruct((3, r_pad), jnp.float32),
        grid_spec=pltpu.PrefetchScalarGridSpec(
            num_scalar_prefetch=0,
            grid=(grid,),
            in_specs=[
                pl.BlockSpec((row_tile, hw), lambda i: (i, 0)),   # big input tile
                pl.BlockSpec((2, row_tile), lambda i: (0, i)),    # packed targets
            ],
            out_specs=pl.BlockSpec((3, row_tile), lambda i: (0, i)),  # lane-dense stats
        ),
        compiler_params=pltpu.CompilerParams(
            dimension_semantics=("parallel",),          # no cross-step state -> megacore OK
            vmem_limit_bytes=vmem_limit,
        ),
    )(x_2d, targets)

    mu = stats[0, :rows]
    std = stats[1, :rows]
    loss = jnp.sum(stats[2]) * (1.0 / rows)             # sum of per-row partials / (B*C)
    return mu, std, loss


class BNMatching:
    """JAX/Pallas port of the PyTorch BNMatching module."""

    def __init__(self, target, name):
        # target: (B, C, H, W). Target stats are "detached" constants (plain JAX glue).
        b, c, h, w = target.shape
        f = target.reshape(b, c, h * w).astype(jnp.float32)
        self.mu_target = jnp.mean(f, axis=2)                     # (B, C)
        self.std_target = jnp.std(f, axis=2, ddof=1)             # (B, C), unbiased
        # Packed lane-dense target array fed to the kernel: (2, B*C) f32.
        self._targets = jnp.stack(
            [self.mu_target.reshape(-1), self.std_target.reshape(-1)], axis=0)
        self.name = name
        self.loss = None

    def __call__(self, x):
        b, c, h, w = x.shape
        x_2d = x.reshape(b * c, h * w)                   # native dtype; cast happens in-kernel
        mu, std, loss = _bn_matching_forward(x_2d, self._targets)
        self.mu_input = mu.reshape(b, c)
        self.std_input = std.reshape(b, c)
        self.loss = loss
        return x                                          # forward returns the input unchanged


def _reference_check(module, x, b, c, h, w, tag):
    f_in = x.astype(jnp.float32).reshape(b, c, h * w)
    mu_ref = jnp.mean(f_in, axis=2)
    std_ref = jnp.std(f_in, axis=2, ddof=1)
    loss_ref = (jnp.mean((mu_ref - module.mu_target) ** 2)
                + jnp.mean((std_ref - module.std_target) ** 2))
    # MXU-based f32 row reductions + one-pass variance: allow a little slack
    # vs. the exact XLA reference.
    assert jnp.allclose(module.mu_input, mu_ref, atol=1e-3, rtol=1e-3), tag
    assert jnp.allclose(module.std_input, std_ref, atol=1e-3, rtol=1e-3), tag
    assert jnp.allclose(module.loss, loss_ref, atol=1e-3, rtol=1e-3), tag


if __name__ == "__main__":
    key = jax.random.PRNGKey(0)
    k_t, k_x, k_t2, k_x2 = jax.random.split(key, 4)

    # --- Test 1: the module's nominal small shape (single tile, grid = 1). ---
    B, C, H, W = 2, 4, 16, 16
    target = jax.random.normal(k_t, (B, C, H, W), dtype=jnp.float32)
    x = jax.random.normal(k_x, (B, C, H, W), dtype=jnp.float32) * 1.5 + 0.3

    module = BNMatching(target, name="bn_match_0")
    out = module(x)
    jax.block_until_ready(out)
    jax.block_until_ready(module.loss)

    assert out.shape == x.shape
    assert jnp.allclose(out, x)
    _reference_check(module, x, B, C, H, W, "small")

    # --- Test 2: bf16 input, multi-tile grid with a ragged last tile
    #             (exercises native-dtype in-kernel cast, parallel grid, masking). ---
    B2, C2, H2, W2 = 2, 600, 16, 16
    target2 = jax.random.normal(k_t2, (B2, C2, H2, W2), dtype=jnp.bfloat16)
    x2 = (jax.random.normal(k_x2, (B2, C2, H2, W2), dtype=jnp.float32)
          * 1.5 + 0.3).astype(jnp.bfloat16)

    module2 = BNMatching(target2, name="bn_match_1")
    out2 = module2(x2)
    jax.block_until_ready(out2)
    jax.block_until_ready(module2.loss)

    assert out2.shape == x2.shape
    _reference_check(module2, x2, B2, C2, H2, W2, "bf16_multi_tile")

    print("KERNEL_OK")
</pallas_src>

<mosaic_0001>
module attributes {stable_mosaic.version = 11 : i64} {
  func.func @_bn_matching_kernel(%arg0: i32, %arg1: memref<8x256xf32, #tpu.memory_space<vmem>>, %arg2: memref<2x8xf32, #tpu.memory_space<vmem>>, %arg3: memref<3x8xf32, #tpu.memory_space<vmem>>) attributes {dimension_semantics = [#tpu.dimension_semantics<parallel>], iteration_bounds = array<i64: 1>, scalar_prefetch = 0 : i64, scratch_operands = 0 : i64, tpu.core_type = #tpu.core_type<tc>, window_params = [{transform_indices = @transform_0, window_bounds = array<i64: 8, 256>}, {transform_indices = @transform_1, window_bounds = array<i64: 2, 8>}, {transform_indices = @transform_2, window_bounds = array<i64: 3, 8>}]} {
    %c0 = arith.constant 0 : index
    %c0_0 = arith.constant 0 : index
    %0 = vector.load %arg1[%c0, %c0_0] : memref<8x256xf32, #tpu.memory_space<vmem>>, vector<8x256xf32>
    %cst = arith.constant 1.000000e+00 : f32
    %1 = vector.broadcast %cst : f32 to vector<8x256xf32>
    %cst_1 = arith.constant dense<0.000000e+00> : vector<8x8xf32>
    %2 = tpu.matmul %1, %0, %cst_1 {dimension_numbers = #tpu.dot_dimension_numbers<[1], [1], [0], [0], [0, 0, 1, 0], [], []>} : vector<8x256xf32>, vector<8x256xf32>, vector<8x8xf32> -> vector<8x8xf32>
    %3 = vector.extract_strided_slice %2 {offsets = [0, 0], sizes = [1, 8], strides = [1, 1]} : vector<8x8xf32> to vector<1x8xf32>
    %4 = arith.mulf %0, %0 : vector<8x256xf32>
    %cst_2 = arith.constant dense<0.000000e+00> : vector<8x8xf32>
    %5 = tpu.matmul %1, %4, %cst_2 {dimension_numbers = #tpu.dot_dimension_numbers<[1], [1], [0], [0], [0, 0, 1, 0], [], []>} : vector<8x256xf32>, vector<8x256xf32>, vector<8x8xf32> -> vector<8x8xf32>
    %6 = vector.extract_strided_slice %5 {offsets = [0, 0], sizes = [1, 8], strides = [1, 1]} : vector<8x8xf32> to vector<1x8xf32>
    %cst_3 = arith.constant 3.906250e-03 : f32
    %7 = vector.broadcast %cst_3 : f32 to vector<1x8xf32>
    %8 = arith.mulf %3, %7 : vector<1x8xf32>
    %9 = arith.mulf %3, %8 : vector<1x8xf32>
    %10 = arith.subf %6, %9 : vector<1x8xf32>
    %cst_4 = arith.constant 0.00392156886 : f32
    %11 = vector.broadcast %cst_4 : f32 to vector<1x8xf32>
    %12 = arith.mulf %10, %11 : vector<1x8xf32>
    %cst_5 = arith.constant 0.000000e+00 : f32
    %13 = vector.broadcast %cst_5 : f32 to vector<1x8xf32>
    %14 = arith.maximumf %12, %13 : vector<1x8xf32>
    %15 = math.sqrt %14 : vector<1x8xf32>
    %c8_i32 = arith.constant 8 : i32
    %16 = arith.muli %arg0, %c8_i32 : i32
    %17 = tpu.iota {dimensions = array<i32: 1>} : vector<1x8xi32>
    %18 = vector.broadcast %16 : i32 to vector<1x8xi32>
    %19 = arith.addi %18, %17 : vector<1x8xi32>
    %c8_i32_6 = arith.constant 8 : i32
    %20 = vector.broadcast %c8_i32_6 : i32 to vector<1x8xi32>
    %21 = arith.cmpi slt, %19, %20 : vector<1x8xi32>
    %c0_7 = arith.constant 0 : index
    %c0_8 = arith.constant 0 : index
    %22 = vector.load %arg2[%c0_7, %c0_8] : memref<2x8xf32, #tpu.memory_space<vmem>>, vector<1x8xf32>
    %23 = arith.subf %8, %22 : vector<1x8xf32>
    %c1 = arith.constant 1 : index
    %c0_9 = arith.constant 0 : index
    %24 = vector.load %arg2[%c1, %c0_9] : memref<2x8xf32, #tpu.memory_space<vmem>>, vector<1x8xf32>
    %25 = arith.subf %15, %24 : vector<1x8xf32>
    %26 = arith.mulf %23, %23 : vector<1x8xf32>
    %27 = arith.mulf %25, %25 : vector<1x8xf32>
    %28 = arith.addf %26, %27 : vector<1x8xf32>
    %cst_10 = arith.constant 0.000000e+00 : f32
    %29 = vector.broadcast %cst_10 : f32 to vector<1x8xf32>
    %30 = arith.select %21, %28, %29 : vector<1x8xi1>, vector<1x8xf32>
    %c0_11 = arith.constant 0 : index
    %c0_12 = arith.constant 0 : index
    %31 = vector.load %arg3[%c0_11, %c0_12] : memref<3x8xf32, #tpu.memory_space<vmem>>, vector<1x8xf32>
    tpu.vector_store %arg3[%c0_11, %c0_12], %8 {strides = array<i32>} : memref<3x8xf32, #tpu.memory_space<vmem>>, vector<1x8xf32>,
    %c1_13 = arith.constant 1 : index
    %c0_14 = arith.constant 0 : index
    %32 = vector.load %arg3[%c1_13, %c0_14] : memref<3x8xf32, #tpu.memory_space<vmem>>, vector<1x8xf32>
    tpu.vector_store %arg3[%c1_13, %c0_14], %15 {strides = array<i32>} : memref<3x8xf32, #tpu.memory_space<vmem>>, vector<1x8xf32>,
    %c2 = arith.constant 2 : index
    %c0_15 = arith.constant 0 : index
    %33 = vector.load %arg3[%c2, %c0_15] : memref<3x8xf32, #tpu.memory_space<vmem>>, vector<1x8xf32>
    tpu.vector_store %arg3[%c2, %c0_15], %30 {strides = array<i32>} : memref<3x8xf32, #tpu.memory_space<vmem>>, vector<1x8xf32>,
    return
  }
  func.func @transform_0(%arg0: i32) -> (i32, i32) {
    %c0_i32 = arith.constant 0 : i32
    %c0_i32_0 = arith.constant 0 : i32
    return %arg0, %c0_i32 : i32, i32
  }
  func.func @transform_1(%arg0: i32) -> (i32, i32) {
    %c0_i32 = arith.constant 0 : i32
    %c0_i32_0 = arith.constant 0 : i32
    return %c0_i32, %arg0 : i32, i32
  }
  func.func @transform_2(%arg0: i32) -> (i32, i32) {
    %c0_i32 = arith.constant 0 : i32
    %c0_i32_0 = arith.constant 0 : i32
    return %c0_i32, %arg0 : i32, i32
  }
}

</mosaic_0001>

<llo_original>
// kernel: tpu_custom_call.1
$region0: #{tpu_custom_call.1}
  #allocation0 [shape = 'u32[]', space=smem, size = 0x4, offset = 0x4, fixed_abs, tag = 'smem constant byte address 0x4 - core index']
  #allocation1 [shape = 'u32[144,128]{1,0:T(1,128)}', space=vmem, size = 0x12000, scoped, tag = 'internal scratch']
  %s0 = inlined_call_operand.hbm [shape: f32[8,256], index: 0, kind: input, shape index: {}]
  %s1 = inlined_call_operand.hbm [shape: f32[2,8], index: 1, kind: input, shape index: {}]
  %s2 = inlined_call_operand.hbm [shape: f32[3,8], index: 2, kind: output, shape index: {}]
  %s3 = sld [smem:[#allocation0]]
  $region26: #{tpu_custom_call.1} parent=0
    _
  %s5 = ssub.s32 1, %s3
  %s6 = scalar_select 0, %s5, %s3
  $region1: #{tpu_custom_call.1} parent=0
    #allocation2 [shape = 'u8[8192]{0}', space=vmem, size = 0x2000, scoped, tag = 'input window, operand 0, single buffered']
    #allocation3 [shape = 's32[1]{0}', space=sflag, size = 0x4, scoped, tag = 'scoped memory for tpu_custom_call.1']
    #allocation4 [shape = 's32[1]{0}', space=sflag, size = 0x4, scoped, tag = 'scoped memory for tpu_custom_call.1']
    #allocation5 [shape = 'u8[1024]{0}', space=vmem, size = 0x400, scoped, tag = 'input window, operand 1, single buffered']
    #allocation6 [shape = 's32[1]{0}', space=sflag, size = 0x4, scoped, tag = 'scoped memory for tpu_custom_call.1']
    #allocation7 [shape = 'u8[2048]{0}', space=vmem, size = 0x800, scoped, tag = 'output window, operand 0, single buffered']
    %7 = vsyncpa [#allocation3], 0
    %8 = vsyncpa [#allocation6], 0
    %9 = vsyncpa [#allocation4], 0
    // Predicated region
    $region2: #{tpu_custom_call.1} parent=1 // pred_check
      _
    $region3: #{tpu_custom_call.1} parent=1 // pred_check_branch
      %11 = sbr.rel (0) target = $region5
    $region4: #{tpu_custom_call.1} parent=1 // pred_region
      %s13 = ssub.s32 256, 256
      %14 = vsyncadd [#allocation3], %s13
      %s16 = sshll.u32 [#allocation2], 4
      %s17 = int_to_ptr.vmem [resolvable:$true] %s16
      %19 = dma.hbm_to_vmem [thread:$0]  %s0, 256, %s17, [#allocation3]
    $region5: #{tpu_custom_call.1} parent=1 // pred_fallthru
      _
    // Predicated region
    $region6: #{tpu_custom_call.1} parent=1 // pred_check
      _
    $region7: #{tpu_custom_call.1} parent=1 // pred_check_branch
      %21 = sbr.rel (0) target = $region9
    $region8: #{tpu_custom_call.1} parent=1 // pred_region
      %s23 = ssub.s32 32, 32
      %24 = vsyncadd [#allocation6], %s23
      %s26 = sshll.u32 [#allocation5], 4
      %s27 = int_to_ptr.vmem [resolvable:$true] %s26
      %29 = dma.hbm_to_vmem [thread:$0]  %s1, 32, %s27, [#allocation6]
    $region9: #{tpu_custom_call.1} parent=1 // pred_fallthru
      _
    // Predicated region
    $region10: #{tpu_custom_call.1} parent=1 // pred_check
      _
    $region11: #{tpu_custom_call.1} parent=1 // pred_check_branch
      %31 = sbr.rel (0) target = $region13
    $region12: #{tpu_custom_call.1} parent=1 // pred_region
      %32 = dma.done [#allocation3], 256
    $region13: #{tpu_custom_call.1} parent=1 // pred_fallthru
      _
    // Predicated region
    $region14: #{tpu_custom_call.1} parent=1 // pred_check
      _
    $region15: #{tpu_custom_call.1} parent=1 // pred_check_branch
      %34 = sbr.rel (0) target = $region17
    $region16: #{tpu_custom_call.1} parent=1 // pred_region
      %35 = dma.done [#allocation6], 32
    $region17: #{tpu_custom_call.1} parent=1 // pred_fallthru
      _
    %v36 = vld [vmem:[#allocation2] sm:$0xff]
    %v37 = vld [vmem:[#allocation2 + $0x8] sm:$0xff]
    %38 = vmatprep.subr.mxu0 0.0
    %39 = vmatpush1.xpose.msra.mxu0 0.0
    %40 = vmatprep.subr.mxu0 0.0
    %41 = vmatpush1.xpose.msra.mxu0 0.0
    %42 = vmatprep.subr.mxu0 0.0
    %43 = vmatpush1.xpose.msra.mxu0 0.0
    %44 = vmatprep.subr.mxu0 0.0
    %45 = vmatpush1.xpose.msra.mxu0 0.0
    %46 = vmatprep.subr.mxu0 0.0
    %47 = vmatpush1.xpose.msra.mxu0 0.0
    %48 = vmatprep.subr.mxu0 0.0
    %49 = vmatpush1.xpose.msra.mxu0 0.0
    %50 = vmatprep.subr.mxu0 0.0
    %51 = vmatpush1.xpose.msra.mxu0 0.0
    %52 = vmatprep.subr.mxu0 0.0
    %53 = vmatpush1.xpose.msra.mxu0 0.0
    %54 = vmatprep.subr.mxu0 0.0
    %55 = vmatpush1.xpose.msra.mxu0 0.0
    %56 = vmatprep.subr.mxu0 0.0
    %57 = vmatpush1.xpose.msra.mxu0 0.0
    %58 = vmatprep.subr.mxu0 0.0
    %59 = vmatpush1.xpose.msra.mxu0 0.0
    %60 = vmatprep.subr.mxu0 0.0
    %61 = vmatpush1.xpose.msra.mxu0 0.0
    %62 = vmatprep.subr.mxu0 0.0
    %63 = vmatpush1.xpose.msra.mxu0 0.0
    %64 = vmatprep.subr.mxu0 0.0
    %65 = vmatpush1.xpose.msra.mxu0 0.0
    %66 = vmatprep.subr.mxu0 0.0
    %67 = vmatpush1.xpose.msra.mxu0 0.0
    %68 = vmatprep.subr.mxu0 %v37
    %69 = vmatpush1.xpose.msra.mxu0 %v36
    %70 = vmatprep.subr.mxu0 0.0
    %71 = vmatpush2.xpose.msra.mxu0 0.0
    %72 = vmatprep.subr.mxu0 0.0
    %73 = vmatpush2.xpose.msra.mxu0 0.0
    %74 = vmatprep.subr.mxu0 0.0
    %75 = vmatpush2.xpose.msra.mxu0 0.0
    %76 = vmatprep.subr.mxu0 0.0
    %77 = vmatpush2.xpose.msra.mxu0 0.0
    %78 = vmatprep.subr.mxu0 0.0
    %79 = vmatpush2.xpose.msra.mxu0 0.0
    %80 = vmatprep.subr.mxu0 0.0
    %81 = vmatpush2.xpose.msra.mxu0 0.0
    %82 = vmatprep.subr.mxu0 0.0
    %83 = vmatpush2.xpose.msra.mxu0 0.0
    %84 = vmatprep.subr.mxu0 0.0
    %85 = vmatpush2.xpose.msra.mxu0 0.0
    %86 = vmatprep.subr.mxu0 0.0
    %87 = vmatpush2.xpose.msra.mxu0 0.0
    %88 = vmatprep.subr.mxu0 0.0
    %89 = vmatpush2.xpose.msra.mxu0 0.0
    %90 = vmatprep.subr.mxu0 0.0
    %91 = vmatpush2.xpose.msra.mxu0 0.0
    %92 = vmatprep.subr.mxu0 0.0
    %93 = vmatpush2.xpose.msra.mxu0 0.0
    %94 = vmatprep.subr.mxu0 0.0
    %95 = vmatpush2.xpose.msra.mxu0 0.0
    %96 = vmatprep.subr.mxu0 0.0
    %97 = vmatpush2.xpose.msra.mxu0 0.0
    %98 = vmatprep.subr.mxu0 0.0
    %99 = vmatpush2.xpose.msra.mxu0 0.0
    %100 = vmatprep.subr.mxu0 0.0
    %101 = vmatpush2.xpose.msra.mxu0 0.0
    %102 = vmatprep.mubr.f32.mxu0 1.0
    %103 = vmatmul.mubr.f32.gmra.mxu0 1.0
    %v104 = vpop.f32.mrf.mxu0
    %v105 = vadd.f32 0.0, %v104
    %v106 = vpop.f32.mrf.mxu0
    %107 = vdwg.mxu0
    %v108 = vmul.f32 %v36, %v36
    %v109 = vmul.f32 %v37, %v37
    %110 = vmatprep.subr.mxu0 0.0
    %111 = vmatpush1.xpose.msra.mxu0 0.0
    %112 = vmatprep.subr.mxu0 0.0
    %113 = vmatpush1.xpose.msra.mxu0 0.0
    %114 = vmatprep.subr.mxu0 0.0
    %115 = vmatpush1.xpose.msra.mxu0 0.0
    %116 = vmatprep.subr.mxu0 0.0
    %117 = vmatpush1.xpose.msra.mxu0 0.0
    %118 = vmatprep.subr.mxu0 0.0
    %119 = vmatpush1.xpose.msra.mxu0 0.0
    %120 = vmatprep.subr.mxu0 0.0
    %121 = vmatpush1.xpose.msra.mxu0 0.0
    %122 = vmatprep.subr.mxu0 0.0
    %123 = vmatpush1.xpose.msra.mxu0 0.0
    %124 = vmatprep.subr.mxu0 0.0
    %125 = vmatpush1.xpose.msra.mxu0 0.0
    %126 = vmatprep.subr.mxu0 0.0
    %127 = vmatpush1.xpose.msra.mxu0 0.0
    %128 = vmatprep.subr.mxu0 0.0
    %129 = vmatpush1.xpose.msra.mxu0 0.0
    %130 = vmatprep.subr.mxu0 0.0
    %131 = vmatpush1.xpose.msra.mxu0 0.0
    %132 = vmatprep.subr.mxu0 0.0
    %133 = vmatpush1.xpose.msra.mxu0 0.0
    %134 = vmatprep.subr.mxu0 0.0
    %135 = vmatpush1.xpose.msra.mxu0 0.0
    %136 = vmatprep.subr.mxu0 0.0
    %137 = vmatpush1.xpose.msra.mxu0 0.0
    %138 = vmatprep.subr.mxu0 0.0
    %139 = vmatpush1.xpose.msra.mxu0 0.0
    %140 = vmatprep.subr.mxu0 %v109
    %141 = vmatpush1.xpose.msra.mxu0 %v108
    %142 = vmatprep.subr.mxu0 0.0
    %143 = vmatpush2.xpose.msra.mxu0 0.0
    %144 = vmatprep.subr.mxu0 0.0
    %145 = vmatpush2.xpose.msra.mxu0 0.0
    %146 = vmatprep.subr.mxu0 0.0
    %147 = vmatpush2.xpose.msra.mxu0 0.0
    %148 = vmatprep.subr.mxu0 0.0
    %149 = vmatpush2.xpose.msra.mxu0 0.0
    %150 = vmatprep.subr.mxu0 0.0
    %151 = vmatpush2.xpose.msra.mxu0 0.0
    %152 = vmatprep.subr.mxu0 0.0
    %153 = vmatpush2.xpose.msra.mxu0 0.0
    %154 = vmatprep.subr.mxu0 0.0
    %155 = vmatpush2.xpose.msra.mxu0 0.0
    %156 = vmatprep.subr.mxu0 0.0
    %157 = vmatpush2.xpose.msra.mxu0 0.0
    %158 = vmatprep.subr.mxu0 0.0
    %159 = vmatpush2.xpose.msra.mxu0 0.0
    %160 = vmatprep.subr.mxu0 0.0
    %161 = vmatpush2.xpose.msra.mxu0 0.0
    %162 = vmatprep.subr.mxu0 0.0
    %163 = vmatpush2.xpose.msra.mxu0 0.0
    %164 = vmatprep.subr.mxu0 0.0
    %165 = vmatpush2.xpose.msra.mxu0 0.0
    %166 = vmatprep.subr.mxu0 0.0
    %167 = vmatpush2.xpose.msra.mxu0 0.0
    %168 = vmatprep.subr.mxu0 0.0
    %169 = vmatpush2.xpose.msra.mxu0 0.0
    %170 = vmatprep.subr.mxu0 0.0
    %171 = vmatpush2.xpose.msra.mxu0 0.0
    %172 = vmatprep.subr.mxu0 0.0
    %173 = vmatpush2.xpose.msra.mxu0 0.0
    %174 = vmatprep.mubr.f32.mxu0 1.0
    %175 = vmatmul.mubr.f32.gmra.mxu0 1.0
    %v176 = vpop.f32.mrf.mxu0
    %v177 = vadd.f32 0.0, %v176
    %v178 = vpop.f32.mrf.mxu0
    %179 = vdwg.mxu0
    %v180 = vmul.f32 %v105, 0.00390625
    %v181 = vmul.f32 %v105, %v180
    %v182 = vsub.f32 %v177, %v181
    %v183 = vmul.f32 %v182, 0.003921569
    %v184 = vmax.f32 %v183, 0.0
    %v185 = vrsqrt.pop %v184
    %v186 = vmul.f32 %v184, %v185
    %vm187 = vcmp.eq.f32.partialorder %v184, inf
    %v188 = vsel %vm187, %v184, %v186
    %vm189 = vcmp.eq.f32.partialorder %v184, 0.0
    %v190 = vand.u32 %v184, 2147483648
    %v191 = vsel %vm189, %v190, %v188
    %s192 = smul.u32 0, 8
    %v193 = vlaneseq
    %v194 = vand.u32 %v193, 127
    %v195 = vstv %s192
    %v196 = vadd.s32 %v195, %v194
    %vm197 = vcmp.lt.s32.totalorder %v196, 8
    %v198 = vld [vmem:[#allocation5] sm:$0x1]
    %v199 = vsub.f32 %v180, %v198
    %v200 = vld [vmem:[#allocation5 + $0x1] sm:$0x1]
    %v201 = vsub.f32 %v191, %v200
    %v202 = vmul.f32 %v199, %v199
    %v203 = vmul.f32 %v201, %v201
    %v204 = vadd.f32 %v202, %v203
    %v205 = vsel %vm197, %v204, 0.0
    %vm206 = vcmask 57344
    %207 = vst.msk [vmem:[#allocation7] sm:$0x1] %vm206, %v180
    %208 = vst.msk [vmem:[#allocation7 + $0x1] sm:$0x1] %vm206, %v191
    %209 = vst.msk [vmem:[#allocation7 + $0x2] sm:$0x1] %vm206, %v205
    // Predicated region
    $region18: #{tpu_custom_call.1} parent=1 // pred_check
      _
    $region19: #{tpu_custom_call.1} parent=1 // pred_check_branch
      %211 = sbr.rel (0) target = $region21
    $region20: #{tpu_custom_call.1} parent=1 // pred_region
      %s213 = ssub.s32 64, 64
      %214 = vsyncadd [#allocation4], %s213
      %s216 = sshll.u32 [#allocation7], 4
      %s217 = int_to_ptr.vmem [resolvable:$true] %s216
      %219 = dma.vmem_to_hbm [thread:$0]  %s217, 64, %s2, [#allocation4]
    $region21: #{tpu_custom_call.1} parent=1 // pred_fallthru
      _
    // Predicated region
    $region22: #{tpu_custom_call.1} parent=1 // pred_check
      _
    $region23: #{tpu_custom_call.1} parent=1 // pred_check_branch
      %221 = sbr.rel (0) target = $region25
    $region24: #{tpu_custom_call.1} parent=1 // pred_region
      %222 = dma.done [#allocation4], 64
    $region25: #{tpu_custom_call.1} parent=1 // pred_fallthru
      _
    %223 = vsyncpa [#allocation3], 1
    %224 = vsyncpa [#allocation6], 1
    %225 = vsyncpa [#allocation4], 1

</llo_original>
